<compile_context>
chip_gen: v6e
topology: v6e:2x2x1
jax: 0.10.0
libtpu: 0.0.40
codegen_flags: <defaults>
</compile_context>

<pallas_src>
import functools
from collections import OrderedDict

import jax
import jax.numpy as jnp
from jax.experimental import pallas as pl
from jax.experimental.pallas import tpu as pltpu


def _ctx_writeback_kernel(ctx_ref, emb_hbm_ref, out_hbm_ref,
                          ctx_tile_ref, sems,
                          *, tile_n, n_ctx, n_total, total_tiles,
                          tiles_per_slab, ring):
    """Overwrite rows [1, 1+n_ctx) of every prompt in this slab with ctx.

    ctx_ref      : (n_ctx, D)          VMEM (resident across grid steps)
    emb_hbm_ref  : (N, L, D)           HBM  (unused: aliased to out_hbm_ref)
    out_hbm_ref  : (N, L, D)           HBM  (aliased with emb_hbm_ref)
    ctx_tile_ref : (tile_n, n_ctx, D)  VMEM scratch (shared source of all DMAs)
    sems         : DMA semaphores, shape (ring,)
    """
    del emb_hbm_ref  # prefix/suffix already present in the aliased output
    slab = pl.program_id(0)

    # Fill the small shared-source scratch ONCE per grid step.  The grid has
    # at most `num_slabs` (<= 2) steps, so this is no longer a per-tile cost,
    # and because it runs inside every step it is megacore-safe under
    # dimension_semantics="parallel" (each core fills its own scratch).
    ctx_tile_ref[...] = jnp.broadcast_to(ctx_ref[...], ctx_tile_ref.shape)

    tile0 = slab * tiles_per_slab
    n_my_tiles = jnp.clip(total_tiles - tile0, 0, tiles_per_slab)

    def wait_slot(slot):
        # Same-shaped descriptor as the issued copies; only transfer size and
        # semaphore matter for the wait (cf. paged-attention wait pattern).
        pltpu.make_async_copy(
            ctx_tile_ref,
            out_hbm_ref.at[pl.ds(0, tile_n), pl.ds(1, n_ctx), :],
            sems.at[slot]).wait()

    def issue_tile(g_tile, slot):
        # Clamp the globally-last tile backwards so ragged N needs no divisor
        # search; the overlap is idempotent (every tile writes identical ctx).
        row0 = jnp.minimum(g_tile * tile_n, n_total - tile_n)
        # TODO(synk): destination window starts at token row 1, so with an
        # (8,128)-tiled HBM layout each prompt's write straddles two sublane
        # tiles; restaging the SOS row would need a per-tile (non-shared)
        # scratch source, so it is left as-is (verify BW on v5e via xprof).
        pltpu.make_async_copy(
            ctx_tile_ref,
            out_hbm_ref.at[pl.ds(row0, tile_n), pl.ds(1, n_ctx), :],
            sems.at[slot]).start()

    # Up to `ring` strided HBM writes in flight, all sourced from the same
    # (write-once) scratch.  The loop body is DMA-issue only: no VMEM fill.
    @pl.loop(0, n_my_tiles)
    def _(t):
        slot = t % ring

        @pl.when(t >= ring)
        def _():
            wait_slot(slot)          # reuse a slot only after its copy landed

        issue_tile(tile0 + t, slot)

    # Drain the (up to `ring`) copies still in flight at the end of the slab.
    n_out = jnp.minimum(n_my_tiles, ring)

    @pl.loop(0, ring)
    def _(j):
        @pl.when(j < n_out)
        def _():
            wait_slot(jnp.maximum(n_my_tiles - 1 - j, 0) % ring)


def assemble_prompts(emb_all, ctx, *, n_ctx, tile_n_cap=128, ring=4,
                     num_slabs_hint=2):
    """In-place ctx write: rows [1, 1+n_ctx) of every prompt <- ctx (broadcast).

    emb_all : (N_total, L, D) full token embeddings (prefix | 'X' rows | suffix)
    ctx     : (n_ctx, D) learnable context vectors
    Returns emb_all with the placeholder rows replaced by ctx (aliased output).
    """
    N, L, D = emb_all.shape
    nc, Dc = ctx.shape
    assert nc == n_ctx and Dc == D and 1 + n_ctx <= L
    ctx = ctx.astype(emb_all.dtype)          # hoisted cast: kernel is a pure copy

    tile_n = min(tile_n_cap, N)              # small fixed scratch, works for any N
    total_tiles = pl.cdiv(N, tile_n)
    num_slabs = max(1, min(num_slabs_hint, total_tiles))  # <=2: one per TC on v7x
    tiles_per_slab = pl.cdiv(total_tiles, num_slabs)

    kernel = functools.partial(
        _ctx_writeback_kernel, tile_n=tile_n, n_ctx=n_ctx, n_total=N,
        total_tiles=total_tiles, tiles_per_slab=tiles_per_slab, ring=ring)

    # Scratch is tile_n*n_ctx*D*itemsize (~0.5 MiB at the defaults, ~6 MiB even
    # at CONCH-scale D=768/n_ctx=16) -> well under every generation's scoped
    # VMEM default, so no vmem_limit_bytes override is needed.
    return pl.pallas_call(
        kernel,
        out_shape=jax.ShapeDtypeStruct((N, L, D), emb_all.dtype),
        grid=(num_slabs,),
        in_specs=[
            pl.BlockSpec((n_ctx, D), lambda i: (0, 0)),   # ctx resident in VMEM
            pl.BlockSpec(memory_space=pl.ANY),            # embeddings stay in HBM
        ],
        out_specs=pl.BlockSpec(memory_space=pl.ANY),      # aliased with embeddings
        scratch_shapes=[
            pltpu.VMEM((tile_n, n_ctx, D), emb_all.dtype),
            pltpu.SemaphoreType.DMA((ring,)),
        ],
        input_output_aliases={1: 0},           # emb_all -> out (true in-place)
        compiler_params=pltpu.CompilerParams(
            dimension_semantics=("parallel",)),  # disjoint slabs: megacore-legal
    )(ctx, emb_all)


class PromptLearnerPallas:
    """Synthetic JAX/Pallas PromptLearner.

    Parameters (ctx vectors, token embeddings) are generated deterministically
    in-script; there is no tokenizer / CONCH checkpoint here.
    """

    def __init__(self, key, class_names, llm_descriptions_num_prompts,
                 n_ctx=8, ctx_dim=128, total_len=32,
                 class_specific_token=False, class_token_position='end',
                 dtype=jnp.float32, tile_n_cap=128):
        # TODO(synk): 'middle'/'front' class_token_position need ragged
        # per-name slicing (data-dependent lengths); only 'end' is implemented.
        assert class_token_position == 'end'
        # TODO(synk): class_specific_token=True (per-class ctx, ctx.dim()==3)
        # is not implemented; shared-ctx path only.
        assert not class_specific_token

        self.n_cls = len(class_names)
        self.n_ctx = n_ctx
        self.ctx_dim = ctx_dim
        self.total_len = total_len
        suffix_len = total_len - 1 - n_ctx
        assert suffix_len > 0

        k_ctx, k_emb = jax.random.split(key)
        # nn.init.normal_(ctx_vectors, std=0.02)
        self.ctx = (0.02 * jax.random.normal(k_ctx, (n_ctx, ctx_dim))).astype(dtype)

        # Synthetic "token embeddings" per description key (stand-in for
        # conch_model.text.token_embedding(tokenized_prompts[k])).
        self.token_prefix = OrderedDict()
        self.token_suffix = OrderedDict()
        self.key_slices = OrderedDict()      # key -> (offset, n_prompts)
        emb_blocks = []
        off = 0
        for i, (k, n_prompts) in enumerate(llm_descriptions_num_prompts.items()):
            ek = jax.random.fold_in(k_emb, i)
            emb = jax.random.normal(ek, (n_prompts, total_len, ctx_dim)).astype(dtype)
            self.token_prefix[k] = emb[:, :1, :]              # SOS embedding
            self.token_suffix[k] = emb[:, 1 + n_ctx:, :]      # class/desc + EOS + pad
            self.key_slices[k] = (off, n_prompts)
            emb_blocks.append(emb)
            off += n_prompts

        # Persistent stacked prompt buffer (all keys). prefix/suffix rows are
        # fixed forever; only the n_ctx placeholder rows refresh each forward.
        self.prompt_buf = jnp.concatenate(emb_blocks, axis=0)

        # jit + donation => the pallas-level input_output_aliases becomes a
        # true in-place ctx-row update (no whole-buffer copy per forward).
        self._assemble = jax.jit(
            functools.partial(assemble_prompts, n_ctx=n_ctx, tile_n_cap=tile_n_cap),
            donate_argnums=(0,))

    def forward(self):
        """Refresh the ctx rows of the stacked prompt buffer (in place).

        Returns (prompt_buf, key_slices): for each key k with
        (off, n) = key_slices[k],  prompt_buf[off:off+n] is exactly
        cat([prefix_k, ctx, suffix_k], dim=1).  The stacked form is returned
        instead of a per-key dict because eager per-key slicing materializes
        full (n, L, D) copies every forward (~L/n_ctx x more HBM traffic than
        the kernel itself); slice inside the downstream text-encoder jit.
        """
        self.prompt_buf = self._assemble(self.prompt_buf, self.ctx)
        return self.prompt_buf, self.key_slices

    def prompts_dict(self):
        """PyTorch-parity OrderedDict (materializes copies; tests/demo only)."""
        buf, slices = self.forward()
        return OrderedDict((k, buf[off:off + n]) for k, (off, n) in slices.items())


def _reference(prefix, ctx, suffix):
    n = prefix.shape[0]
    ctx_b = jnp.broadcast_to(ctx[None], (n,) + ctx.shape).astype(prefix.dtype)
    return jnp.concatenate([prefix, ctx_b, suffix], axis=1)


if __name__ == "__main__":
    key = jax.random.PRNGKey(0)

    class_names = ["tumor", "normal"]
    # number of LLM-generated descriptions per key
    llm_descriptions_num_prompts = OrderedDict([("tumor", 4), ("normal", 4)])

    learner = PromptLearnerPallas(
        key, class_names, llm_descriptions_num_prompts,
        n_ctx=8, ctx_dim=128, total_len=32,
        class_token_position='end', class_specific_token=False)

    # --- forward #1: check PyTorch-parity prompts against the reference ---
    prompts = learner.prompts_dict()
    for k, v in prompts.items():
        jax.block_until_ready(v)
        ref = _reference(learner.token_prefix[k], learner.ctx, learner.token_suffix[k])
        assert v.shape == ref.shape, (v.shape, ref.shape)
        assert jnp.allclose(v, ref), f"mismatch for key {k}"

    # --- forward #2: the donated/aliased prompt buffer must stay reusable ---
    prompts2 = learner.prompts_dict()
    for k, v in prompts2.items():
        jax.block_until_ready(v)
        ref = _reference(learner.token_prefix[k], learner.ctx, learner.token_suffix[k])
        assert jnp.allclose(v, ref), f"mismatch (2nd forward) for key {k}"

    # --- robustness check: ragged N + tiny tile cap exercises the in-kernel
    #     DMA ring, the clamped (idempotent) last tile, and 2 "parallel" slabs.
    N2, L2, D2, NC2 = 13, 16, 128, 8
    emb2 = jax.random.normal(jax.random.fold_in(key, 7), (N2, L2, D2), jnp.float32)
    ctx2 = (0.02 * jax.random.normal(jax.random.fold_in(key, 8), (NC2, D2))
            ).astype(jnp.float32)
    ref2 = emb2.at[:, 1:1 + NC2, :].set(jnp.broadcast_to(ctx2, (N2, NC2, D2)))
    out2 = jax.jit(functools.partial(assemble_prompts, n_ctx=NC2, tile_n_cap=4),
                   donate_argnums=(0,))(emb2, ctx2)
    jax.block_until_ready(out2)
    assert out2.shape == (N2, L2, D2)
    assert jnp.allclose(out2, ref2), "mismatch in ragged-N / DMA-ring path"

    print("KERNEL_OK")
</pallas_src>

<mosaic_0001>
module attributes {stable_mosaic.version = 11 : i64} {
  func.func @_ctx_writeback_kernel(%arg0: i32, %arg1: memref<8x128xf32, #tpu.memory_space<vmem>>, %arg2: memref<8x32x128xf32, #tpu.memory_space<any>>, %arg3: memref<8x32x128xf32, #tpu.memory_space<any>>, %arg4: memref<8x8x128xf32, #tpu.memory_space<vmem>>, %arg5: memref<4x!tpu.dma_semaphore, #tpu.memory_space<semaphore_mem>>) attributes {dimension_semantics = [#tpu.dimension_semantics<parallel>], iteration_bounds = array<i64: 1>, scalar_prefetch = 0 : i64, scratch_operands = 2 : i64, tpu.core_type = #tpu.core_type<tc>, window_params = [{pipeline_mode = #tpu.pipeline_mode<synchronous>, transform_indices = @transform_0, window_bounds = array<i64: 8, 128>}, {}, {}]} {
    %c0 = arith.constant 0 : index
    %c0_0 = arith.constant 0 : index
    %0 = vector.load %arg1[%c0, %c0_0] : memref<8x128xf32, #tpu.memory_space<vmem>>, vector<8x128xf32>
    %1 = vector.shape_cast %0 : vector<8x128xf32> to vector<1x8x128xf32>
    %2 = vector.broadcast %1 : vector<1x8x128xf32> to vector<8x8x128xf32>
    %c0_1 = arith.constant 0 : index
    %c0_2 = arith.constant 0 : index
    %c0_3 = arith.constant 0 : index
    %3 = vector.load %arg4[%c0_1, %c0_2, %c0_3] : memref<8x8x128xf32, #tpu.memory_space<vmem>>, vector<8x8x128xf32>
    tpu.vector_store %arg4[%c0_1, %c0_2, %c0_3], %2 {strides = array<i32>} : memref<8x8x128xf32, #tpu.memory_space<vmem>>, vector<8x8x128xf32>,
    %c1_i32 = arith.constant 1 : i32
    %4 = arith.muli %arg0, %c1_i32 : i32
    %c1_i32_4 = arith.constant 1 : i32
    %5 = arith.subi %c1_i32_4, %4 : i32
    %c0_i32 = arith.constant 0 : i32
    %c1_i32_5 = arith.constant 1 : i32
    %6 = arith.maxsi %c0_i32, %5 : i32
    %7 = arith.minsi %c1_i32_5, %6 : i32
    %c0_i32_6 = arith.constant 0 : i32
    %8 = arith.subi %7, %c0_i32_6 : i32
    %c1_i32_7 = arith.constant 1 : i32
    %c1_i32_8 = arith.constant 1 : i32
    %9 = arith.subi %c1_i32_7, %c1_i32_8 : i32
    %10 = arith.addi %8, %9 : i32
    %c1_i32_9 = arith.constant 1 : i32
    %11 = arith.divsi %10, %c1_i32_9 : i32
    %c1_i32_10 = arith.constant 1 : i32
    %c0_i32_11 = arith.constant 0 : i32
    %c0_i32_12 = arith.constant 0 : i32
    %12 = arith.subi %11, %c0_i32_12 : i32
    %13 = arith.addi %c0_i32_12, %12 : i32
    %c1_i32_13 = arith.constant 1 : i32
    scf.for %arg6 = %c0_i32_12 to %13 step %c1_i32_13  : i32 {
      %16 = arith.muli %arg6, %c1_i32_10 : i32
      %17 = arith.addi %c0_i32_11, %16 : i32
      %c4_i32_18 = arith.constant 4 : i32
      %c0_i32_19 = arith.constant 0 : i32
      %18 = arith.cmpi eq, %c4_i32_18, %c0_i32_19 : i32
      %c1_i32_20 = arith.constant 1 : i32
      %19 = arith.select %18, %c1_i32_20, %c4_i32_18 : i32
      %20 = arith.remsi %17, %19 : i32
      %c0_i32_21 = arith.constant 0 : i32
      %21 = arith.cmpi ne, %20, %c0_i32_21 : i32
      %c0_i32_22 = arith.constant 0 : i32
      %22 = arith.cmpi slt, %20, %c0_i32_22 : i32
      %c0_i32_23 = arith.constant 0 : i32
      %23 = arith.cmpi slt, %19, %c0_i32_23 : i32
      %24 = arith.xori %22, %23 : i1
      %25 = arith.andi %24, %21 : i1
      %26 = arith.addi %20, %19 : i32
      %27 = arith.select %25, %26, %20 : i32
      %c4_i32_24 = arith.constant 4 : i32
      %28 = arith.cmpi sge, %17, %c4_i32_24 : i32
      %29 = arith.extui %28 : i1 to i32
      %c0_i32_25 = arith.constant 0 : i32
      %30 = arith.cmpi ne, %29, %c0_i32_25 : i32
      scf.if %30 {
        %c0_i32_29 = arith.constant 0 : i32
        %c1_i32_30 = arith.constant 1 : i32
        %c0_i32_31 = arith.constant 0 : i32
        %37 = tpu.memref_slice %arg3[%c0_i32_29, %c1_i32_30, %c0_i32_31] : memref<8x32x128xf32, #tpu.memory_space<any>> -> memref<8x8x128xf32, #tpu.memory_space<any>>
        %38 = tpu.memref_slice %arg5[%27] : memref<4x!tpu.dma_semaphore, #tpu.memory_space<semaphore_mem>> -> memref<1x!tpu.dma_semaphore, #tpu.memory_space<semaphore_mem>>
        %39 = tpu.memref_squeeze %38 : memref<1x!tpu.dma_semaphore, #tpu.memory_space<semaphore_mem>> -> memref<!tpu.dma_semaphore, #tpu.memory_space<semaphore_mem>>
        tpu.wait_dma2 semaphore(%39 : memref<!tpu.dma_semaphore, #tpu.memory_space<semaphore_mem>>) src(%arg4 : memref<8x8x128xf32, #tpu.memory_space<vmem>>) dst(%37 : memref<8x8x128xf32, #tpu.memory_space<any>>)
      } else {
      }
      %31 = arith.addi %4, %17 : i32
      %c8_i32 = arith.constant 8 : i32
      %32 = arith.muli %31, %c8_i32 : i32
      %c0_i32_26 = arith.constant 0 : i32
      %33 = arith.minsi %32, %c0_i32_26 : i32
      %c1_i32_27 = arith.constant 1 : i32
      %c0_i32_28 = arith.constant 0 : i32
      %34 = tpu.memref_slice %arg3[%33, %c1_i32_27, %c0_i32_28] : memref<8x32x128xf32, #tpu.memory_space<any>> -> memref<8x8x128xf32, #tpu.memory_space<any>>
      %35 = tpu.memref_slice %arg5[%27] : memref<4x!tpu.dma_semaphore, #tpu.memory_space<semaphore_mem>> -> memref<1x!tpu.dma_semaphore, #tpu.memory_space<semaphore_mem>>
      %36 = tpu.memref_squeeze %35 : memref<1x!tpu.dma_semaphore, #tpu.memory_space<semaphore_mem>> -> memref<!tpu.dma_semaphore, #tpu.memory_space<semaphore_mem>>
      tpu.enqueue_dma source(%arg4 : memref<8x8x128xf32, #tpu.memory_space<vmem>>) target(%34 : memref<8x8x128xf32, #tpu.memory_space<any>>) target_semaphore(%36 : memref<!tpu.dma_semaphore, #tpu.memory_space<semaphore_mem>>)
    }
    %c4_i32 = arith.constant 4 : i32
    %14 = arith.minsi %7, %c4_i32 : i32
    %c0_i32_14 = arith.constant 0 : i32
    %c4_i32_15 = arith.constant 4 : i32
    %15 = arith.addi %c0_i32_14, %c4_i32_15 : i32
    %c1_i32_16 = arith.constant 1 : i32
    scf.for %arg6 = %c0_i32_14 to %15 step %c1_i32_16  : i32 {
      %c1_i32_18 = arith.constant 1 : i32
      %16 = arith.muli %arg6, %c1_i32_18 : i32
      %c0_i32_19 = arith.constant 0 : i32
      %17 = arith.addi %c0_i32_19, %16 : i32
      %18 = arith.cmpi slt, %17, %14 : i32
      %19 = arith.extui %18 : i1 to i32
      %c0_i32_20 = arith.constant 0 : i32
      %20 = arith.cmpi ne, %19, %c0_i32_20 : i32
      scf.if %20 {
        %c1_i32_21 = arith.constant 1 : i32
        %21 = arith.subi %7, %c1_i32_21 : i32
        %22 = arith.subi %21, %17 : i32
        %c0_i32_22 = arith.constant 0 : i32
        %23 = arith.maxsi %22, %c0_i32_22 : i32
        %c4_i32_23 = arith.constant 4 : i32
        %c0_i32_24 = arith.constant 0 : i32
        %24 = arith.cmpi eq, %c4_i32_23, %c0_i32_24 : i32
        %c1_i32_25 = arith.constant 1 : i32
        %25 = arith.select %24, %c1_i32_25, %c4_i32_23 : i32
        %26 = arith.remsi %23, %25 : i32
        %c0_i32_26 = arith.constant 0 : i32
        %27 = arith.cmpi ne, %26, %c0_i32_26 : i32
        %c0_i32_27 = arith.constant 0 : i32
        %28 = arith.cmpi slt, %26, %c0_i32_27 : i32
        %c0_i32_28 = arith.constant 0 : i32
        %29 = arith.cmpi slt, %25, %c0_i32_28 : i32
        %30 = arith.xori %28, %29 : i1
        %31 = arith.andi %30, %27 : i1
        %32 = arith.addi %26, %25 : i32
        %33 = arith.select %31, %32, %26 : i32
        %c0_i32_29 = arith.constant 0 : i32
        %c1_i32_30 = arith.constant 1 : i32
        %c0_i32_31 = arith.constant 0 : i32
        %34 = tpu.memref_slice %arg3[%c0_i32_29, %c1_i32_30, %c0_i32_31] : memref<8x32x128xf32, #tpu.memory_space<any>> -> memref<8x8x128xf32, #tpu.memory_space<any>>
        %35 = tpu.memref_slice %arg5[%33] : memref<4x!tpu.dma_semaphore, #tpu.memory_space<semaphore_mem>> -> memref<1x!tpu.dma_semaphore, #tpu.memory_space<semaphore_mem>>
        %36 = tpu.memref_squeeze %35 : memref<1x!tpu.dma_semaphore, #tpu.memory_space<semaphore_mem>> -> memref<!tpu.dma_semaphore, #tpu.memory_space<semaphore_mem>>
        tpu.wait_dma2 semaphore(%36 : memref<!tpu.dma_semaphore, #tpu.memory_space<semaphore_mem>>) src(%arg4 : memref<8x8x128xf32, #tpu.memory_space<vmem>>) dst(%34 : memref<8x8x128xf32, #tpu.memory_space<any>>)
      } else {
      }
    }
    %c4_i32_17 = arith.constant 4 : i32
    return
  }
  func.func @transform_0(%arg0: i32) -> (i32, i32) {
    %c0_i32 = arith.constant 0 : i32
    %c0_i32_0 = arith.constant 0 : i32
    %c0_i32_1 = arith.constant 0 : i32
    return %c0_i32, %c0_i32_0 : i32, i32
  }
}

</mosaic_0001>

<llo_original>
// kernel: assemble_prompts.1
$region0: #{assemble_prompts.1}
  #allocation0 [shape = 'u32[]', space=smem, size = 0x4, offset = 0x4, fixed_abs, tag = 'smem constant byte address 0x4 - core index']
  #allocation1 [shape = 'u32[144,128]{1,0:T(1,128)}', space=vmem, size = 0x12000, scoped, tag = 'internal scratch']
  #allocation2 [shape = 'f32[8,8,128]{2,1,0:T(8,128)}', space=vmem, size = 0x8000, scoped, tag = 'scratch operand']
  #allocation3 [shape = 's32[4]{0}', space=sflag, size = 0x10, scoped, tag = 'scratch operand']
  #allocation6 [shape = 's32[]', space=sflag, size = 0x4, offset = 0, fixed_abs, tag = 'sflag constant byte address 0x0 - dummy sync flag']
  %s0 = inlined_call_operand.hbm [shape: f32[8,128], index: 0, kind: input, shape index: {}]
  %s1 = inlined_call_operand.hbm [shape: f32[8,32,128], index: 1, kind: input, shape index: {}, may-alias: {1,2}]
  %s2 = inlined_call_operand.hbm [shape: f32[8,32,128], index: 2, kind: output, shape index: {}, may-alias: {1,2}]
  %s3 = sld [smem:[#allocation0]]
  $region32: #{assemble_prompts.1} parent=0
    _
  %s5 = ssub.s32 1, %s3
  %s6 = scalar_select 0, %s5, %s3
  $region1: #{assemble_prompts.1} parent=0
    #allocation4 [shape = 'u8[4096]{0}', space=vmem, size = 0x1000, scoped, tag = 'input window, operand 0, single buffered']
    #allocation5 [shape = 's32[1]{0}', space=sflag, size = 0x4, scoped, tag = 'scoped memory for assemble_prompts.1']
    %7 = vsyncpa [#allocation5], 0
    // Predicated region
    $region2: #{assemble_prompts.1} parent=1 // pred_check
      _
    $region3: #{assemble_prompts.1} parent=1 // pred_check_branch
      %9 = sbr.rel (0) target = $region5
    $region4: #{assemble_prompts.1} parent=1 // pred_region
      %s11 = ssub.s32 128, 128
      %12 = vsyncadd [#allocation5], %s11
      %s14 = sshll.u32 [#allocation4], 4
      %s15 = int_to_ptr.vmem [resolvable:$true] %s14
      %17 = dma.hbm_to_vmem [thread:$0]  %s0, 128, %s15, [#allocation5]
    $region5: #{assemble_prompts.1} parent=1 // pred_fallthru
      _
    // Predicated region
    $region6: #{assemble_prompts.1} parent=1 // pred_check
      _
    $region7: #{assemble_prompts.1} parent=1 // pred_check_branch
      %19 = sbr.rel (0) target = $region9
    $region8: #{assemble_prompts.1} parent=1 // pred_region
      %20 = dma.done [#allocation5], 128
    $region9: #{assemble_prompts.1} parent=1 // pred_fallthru
      _
    %v21 = vld [vmem:[#allocation4] sm:$0xff]
    %22 = vst [vmem:[#allocation2] sm:$0xff] %v21
    %23 = vst [vmem:[#allocation2 + $0x8] sm:$0xff] %v21
    %24 = vst [vmem:[#allocation2 + $0x10] sm:$0xff] %v21
    %25 = vst [vmem:[#allocation2 + $0x18] sm:$0xff] %v21
    %26 = vst [vmem:[#allocation2 + $0x20] sm:$0xff] %v21
    %27 = vst [vmem:[#allocation2 + $0x28] sm:$0xff] %v21
    %28 = vst [vmem:[#allocation2 + $0x30] sm:$0xff] %v21
    %29 = vst [vmem:[#allocation2 + $0x38] sm:$0xff] %v21
    %s30 = ssub.s32 1, 0
    %p31 = scmp.gt.s32.totalorder %s30, 0
    %s32 = scalar_select %p31, %s30, 0
    %p33 = scmp.lt.s32.totalorder %s32, 1
    %s34 = scalar_select %p33, %s32, 1
    // While loop
    $region10: #{assemble_prompts.1} parent=1 // loop_pre_header
      _
    $region11: #{assemble_prompts.1} parent=1 // loop_header
      %s36 = sphi 0, %s38
      %p37 = scmp.ge.s32.totalorder %s36, %s34
    $region12: #{assemble_prompts.1} parent=1 // loop_header_branch
      %40 = sbr.rel (%p37) target = $region16
    $region13: #{assemble_prompts.1} parent=1 // loop_body
      %p41 = scmp.lt.s32.totalorder %s36, 0
      %s42 = ssub.s32 0, %s36
      %s43 = scalar_select %p41, %s42, %s36
      %s44 = sand.u32 %s43, 3
      %s45 = ssub.s32 0, %s44
      %s46 = scalar_select %p41, %s45, %s44
      %p47 = scmp.ne.s32.totalorder %s46, 0
      %p48 = scmp.lt.s32.totalorder %s46, 0
      %p49 = pnand %p48, %p47
      %p50 = pneg %p49
      %s51 = sadd.s32 %s46, 4
      %s52 = scalar_select %p50, %s51, %s46
      %p53 = scmp.ge.s32.totalorder %s36, 4
      // Predicated region
      $region17: #{assemble_prompts.1} parent=13 // pred_check
        %p54 = pneg %p53
      $region18: #{assemble_prompts.1} parent=13 // pred_check_branch
        %56 = sbr.rel (%p54) target = $region20
      $region19: #{assemble_prompts.1} parent=13 // pred_region
        %s57 = scalar_lea.sflag [#allocation3], %s52
        %s58 = smul.u32 8, 8
        %s59 = smul.u32 %s58, 1
        %s60 = sshll.u32 %s59, 4
        %61 = dma.done %s57, %s60
      $region20: #{assemble_prompts.1} parent=13 // pred_fallthru
        _
      %s62 = sadd.s32 0, %s36
      %s63 = smul.u32 %s62, 8
      %p64 = scmp.lt.s32.totalorder %s63, 0
      %s65 = scalar_select %p64, %s63, 0
      %s66 = smul.u32 %s65, 32
      %s67 = sadd.s32 1, %s66
      %s68 = smul.addr %s67, 16
      %s69 = scalar_lea.hbm %s2, %s68
      %s70 = scalar_lea.sflag [#allocation3], %s52
      %s72 = sshll.u32 [#allocation2], 4
      %s73 = int_to_ptr.vmem [resolvable:$true] %s72
      %75 = dma.vmem_to_hbm [thread:$0]  %s73, 1024, %s69, %s70, 128, 512, 8
    $region14: #{assemble_prompts.1} parent=1 // loop_footer
      %s38 = sadd.s32 %s36, 1
    $region15: #{assemble_prompts.1} parent=1 // loop_footer_branch
      %35 = sbr.rel target = $region11
    $region16: #{assemble_prompts.1} parent=1 // loop_exit
      _
    %p76 = scmp.lt.s32.totalorder %s34, 4
    %s77 = scalar_select %p76, %s34, 4
    loop: start=0, step=1, limit=4
    $region21: #{assemble_prompts.1} parent=1 // loop_pre_header
      _
    $region22: #{assemble_prompts.1} parent=1 // loop_header
      %s79 = sphi 0, %s83
      %p80 = scmp.ge.s32.totalorder %s79, 4
    $region23: #{assemble_prompts.1} parent=1 // loop_header_branch
      %82 = sbr.rel (%p80) target = $region27
    $region24: #{assemble_prompts.1} parent=1 // loop_body
      %p84 = scmp.lt.s32.totalorder %s79, %s77
      // Predicated region
      $region28: #{assemble_prompts.1} parent=24 // pred_check
        %p85 = pneg %p84
      $region29: #{assemble_prompts.1} parent=24 // pred_check_branch
        %87 = sbr.rel (%p85) target = $region31
      $region30: #{assemble_prompts.1} parent=24 // pred_region
        %s88 = ssub.s32 %s34, 1
        %s89 = ssub.s32 %s88, %s79
        %p90 = scmp.gt.s32.totalorder %s89, 0
        %s91 = scalar_select %p90, %s89, 0
        %p92 = scmp.lt.s32.totalorder %s91, 0
        %s93 = ssub.s32 0, %s91
        %s94 = scalar_select %p92, %s93, %s91
        %s95 = sand.u32 %s94, 3
        %s96 = ssub.s32 0, %s95
        %s97 = scalar_select %p92, %s96, %s95
        %p98 = scmp.ne.s32.totalorder %s97, 0
        %p99 = scmp.lt.s32.totalorder %s97, 0
        %p100 = pnand %p99, %p98
        %p101 = pneg %p100
        %s102 = sadd.s32 %s97, 4
        %s103 = scalar_select %p101, %s102, %s97
        %s104 = scalar_lea.sflag [#allocation3], %s103
        %s105 = smul.u32 8, 8
        %s106 = smul.u32 %s105, 1
        %s107 = sshll.u32 %s106, 4
        %108 = dma.done %s104, %s107
      $region31: #{assemble_prompts.1} parent=24 // pred_fallthru
        _
    $region25: #{assemble_prompts.1} parent=1 // loop_footer
      %s83 = sadd.s32 1, %s79
    $region26: #{assemble_prompts.1} parent=1 // loop_footer_branch
      %78 = sbr.rel target = $region22
    $region27: #{assemble_prompts.1} parent=1 // loop_exit
      _
    %109 = vsyncpa [#allocation5], 1
  %110 = vsyncmov [#allocation3]
  %s111 = vpop.sfrf %110
  %p112 = scmp.eq.s32.totalorder %s111, 0
  %p113 = pneg %p112
  %115 = shalt.err (%p113)
  %s116 = scalar_lea.sflag [#allocation3], 1
  %117 = vsyncmov %s116
  %s118 = vpop.sfrf %117
  %p119 = scmp.eq.s32.totalorder %s118, 0
  %p120 = pneg %p119
  %122 = shalt.err (%p120)
  %s123 = scalar_lea.sflag [#allocation3], 2
  %124 = vsyncmov %s123
  %s125 = vpop.sfrf %124
  %p126 = scmp.eq.s32.totalorder %s125, 0
  %p127 = pneg %p126
  %129 = shalt.err (%p127)
  %s130 = scalar_lea.sflag [#allocation3], 3
  %131 = vsyncmov %s130
  %s132 = vpop.sfrf %131
  %p133 = scmp.eq.s32.totalorder %s132, 0
  %p134 = pneg %p133
  %136 = shalt.err (%p134)

</llo_original>
